<compile_context>
chip_gen: v7x
topology: tpu7x:2x2x1
jax: 0.10.0
libtpu: 0.0.40
codegen_flags: <defaults>
</compile_context>

<pallas_src>
import jax
import jax.numpy as jnp
from jax.experimental import pallas as pl
from jax.experimental.pallas import tpu as pltpu


def _noisy_and_kernel(params_ref, x_ref, o_ref, acc_ref):
    # params_ref: SMEM f32[5] = [a, a*b, sigmoid(-a*b), 1/den, 1/N]
    # x_ref:      VMEM (tile_n, tile_m) input block
    # o_ref:      VMEM (1, tile_m) output block (resident across the N axis)
    # acc_ref:    VMEM (8, tile_m) f32 accumulator (per-sublane partial sums)
    j = pl.program_id(1)  # reduction (N) axis — last grid axis

    @pl.when(j == 0)
    def _init():
        acc_ref[...] = jnp.zeros_like(acc_ref)

    rows = x_ref.shape[0]
    cols = x_ref.shape[1]
    if rows % 8 == 0:
        # Strip-mine: (rows//8, 8, tile_m) summed over the strip axis is plain
        # VPU adds (upcast fused per strip, no full-block f32 temp); the single
        # 8->1 cross-sublane (XLU) reduce is deferred to the finalize step.
        x = x_ref[...].reshape(rows // 8, 8, cols)
        acc_ref[...] += jnp.sum(x, axis=0, dtype=jnp.float32)
    else:
        # Small / ragged bag size: direct reduce into sublane row 0.
        acc_ref[0:1, :] += jnp.sum(
            x_ref[...], axis=0, keepdims=True, dtype=jnp.float32
        )

    @pl.when(j == pl.num_programs(1) - 1)
    def _finalize():
        a = params_ref[0]
        ab = params_ref[1]
        sig_neg_ab = params_ref[2]
        inv_den = params_ref[3]
        inv_n = params_ref[4]
        total = jnp.sum(acc_ref[...], axis=0, keepdims=True)  # one XLU reduce
        mean = total * inv_n
        num = jax.nn.sigmoid(a * mean - ab) - sig_neg_ab
        o_ref[...] = (num * inv_den).astype(o_ref.dtype)


def _vmem_budget_bytes():
    """Generation-aware VMEM sizing: (tile-selection budget, scoped limit)."""
    cap = 64 * 1024 * 1024  # conservative default (v7x: 64 MiB per TC)
    try:
        info = pltpu.get_tpu_info()
        cap = getattr(info, "vmem_capacity_bytes", cap) or cap
    except Exception:
        pass
    if cap <= 64 * 1024 * 1024:
        # v7x: 64 MiB physical per TensorCore — keep comfortable headroom.
        return 40 * 1024 * 1024, 56 * 1024 * 1024
    # v5e / v6e: 128 MiB physical — bigger tiles amortize per-step overhead
    # and keep DMAs long/contiguous.
    return 48 * 1024 * 1024, 64 * 1024 * 1024


def _choose_tiles(n, m, itemsize, budget_bytes):
    """Pick a legal (tile_n, tile_m).

    tile_m: a multiple of 128 dividing m, or m itself when m % 128 != 0
            (full-dim blocks are always legal).  When m >= 256, cap at <= m/2
            so the parallel M axis has >= 2 tiles (v7x megacore sharding).
    tile_n: n itself, or a divisor of n that is a multiple of the dtype's
            packed sublane count (8 f32 / 16 bf16 / 32 int8).
    Largest pair that fits the VMEM budget wins; the fallback is the smallest
    legal pair (minimal footprint).
    """
    m_cands = [t for t in range(m, 0, -1) if m % t == 0 and t % 128 == 0]
    if not m_cands:
        m_cands = [m]  # m not a multiple of 128 -> full-dim block (legal)
    elif m >= 256:
        halved = [t for t in m_cands if t <= m // 2]
        if halved:
            m_cands = halved  # guarantee >= 2 tiles on the parallel axis

    sub = max(8, 32 // itemsize)  # 8 (f32), 16 (bf16/f16), 32 (int8/fp8)
    n_cands = sorted(
        {n} | {d for d in range(sub, n, sub) if n % d == 0}, reverse=True
    )

    def fits(tn, tm):
        x_bytes = 2 * tn * tm * itemsize      # double-buffered input block
        acc_bytes = 8 * tm * 4                # (8, tile_m) f32 scratch
        out_bytes = 2 * 8 * tm * itemsize     # (1, tile_m) out bufs, 8-sublane padded
        return x_bytes + acc_bytes + out_bytes <= budget_bytes

    for tm in m_cands:
        for tn in n_cands:
            if fits(tn, tm):
                return tn, tm
    # Fallback: smallest legal pair (most conservative VMEM footprint).
    return n_cands[-1], m_cands[-1]


def noisy_and(x, b, *, a=10.0):
    """x: (N, C, H, W) array; b: scalar parameter.  Reduces over dim 0."""
    n = x.shape[0]
    rest_shape = x.shape[1:]
    m = 1
    for d in rest_shape:
        m *= d

    x2d = x.reshape(n, m)

    budget_bytes, vmem_limit = _vmem_budget_bytes()
    tile_n, tile_m = _choose_tiles(n, m, x2d.dtype.itemsize, budget_bytes)

    # Hoisted scalar math: everything that depends only on (a, b, n).
    a_f = jnp.float32(a)
    b_f = jnp.asarray(b, dtype=jnp.float32)
    sig = jax.nn.sigmoid
    sig_neg_ab = sig(-a_f * b_f)
    inv_den = 1.0 / (sig(a_f * (1.0 - b_f)) - sig_neg_ab)
    params = jnp.stack(
        [a_f, a_f * b_f, sig_neg_ab, inv_den, jnp.float32(1.0 / n)]
    ).astype(jnp.float32)

    out2d = pl.pallas_call(
        _noisy_and_kernel,
        out_shape=jax.ShapeDtypeStruct((1, m), x.dtype),
        grid=(m // tile_m, n // tile_n),
        in_specs=[
            pl.BlockSpec(memory_space=pltpu.MemorySpace.SMEM),      # params
            pl.BlockSpec((tile_n, tile_m), lambda i, j: (j, i)),    # x block
        ],
        out_specs=pl.BlockSpec((1, tile_m), lambda i, j: (0, i)),
        scratch_shapes=[pltpu.VMEM((8, tile_m), jnp.float32)],
        compiler_params=pltpu.CompilerParams(
            dimension_semantics=("parallel", "arbitrary"),
            vmem_limit_bytes=vmem_limit,
        ),
    )(params, x2d)

    return out2d.reshape(rest_shape)


def noisy_and_ref(x, b, *, a=10.0):
    mean = jnp.mean(x.astype(jnp.float32), axis=0)
    sig = jax.nn.sigmoid
    return (sig(a * (mean - b)) - sig(-a * b)) / (sig(a * (1.0 - b)) - sig(-a * b))


if __name__ == "__main__":
    key = jax.random.PRNGKey(0)
    # Small NCHW input consistent with the module's conv-style usage.
    x = jax.random.uniform(key, (2, 4, 16, 16), dtype=jnp.float32)

    # Deterministic parameter init (matches nn.Parameter(torch.tensor(0.01))).
    a = 10.0
    b = jnp.float32(0.01)

    out = noisy_and(x, b, a=a)
    out = jax.block_until_ready(out)

    ref = noisy_and_ref(x, b, a=a)
    assert out.shape == ref.shape == (4, 16, 16)
    assert jnp.allclose(out, ref, atol=1e-5, rtol=1e-5)

    print("KERNEL_OK")
</pallas_src>

<mosaic_0001>
module attributes {stable_mosaic.version = 11 : i64} {
  func.func @_noisy_and_kernel(%arg0: i32, %arg1: i32, %arg2: memref<5xf32, #tpu.memory_space<smem>>, %arg3: memref<2x512xf32, #tpu.memory_space<vmem>>, %arg4: memref<1x512xf32, #tpu.memory_space<vmem>>, %arg5: memref<8x512xf32, #tpu.memory_space<vmem>>) attributes {dimension_semantics = [#tpu.dimension_semantics<parallel>, #tpu.dimension_semantics<arbitrary>], iteration_bounds = array<i64: 2, 1>, scalar_prefetch = 0 : i64, scratch_operands = 1 : i64, tpu.core_type = #tpu.core_type<tc>, window_params = [{transform_indices = @transform_0, window_bounds = array<i64: 5>}, {transform_indices = @transform_1, window_bounds = array<i64: 2, 512>}, {transform_indices = @transform_2, window_bounds = array<i64: 1, 512>}]} {
    %c0_i32 = arith.constant 0 : i32
    %0 = arith.cmpi eq, %arg1, %c0_i32 : i32
    %1 = arith.extui %0 : i1 to i32
    %c0_i32_0 = arith.constant 0 : i32
    %2 = arith.cmpi ne, %1, %c0_i32_0 : i32
    scf.if %2 {
      %cst_8 = arith.constant 0.000000e+00 : f32
      %12 = vector.broadcast %cst_8 : f32 to vector<8x512xf32>
      %c0_9 = arith.constant 0 : index
      %c0_10 = arith.constant 0 : index
      %13 = vector.load %arg5[%c0_9, %c0_10] : memref<8x512xf32, #tpu.memory_space<vmem>>, vector<8x512xf32>
      tpu.vector_store %arg5[%c0_9, %c0_10], %12 {strides = array<i32>} : memref<8x512xf32, #tpu.memory_space<vmem>>, vector<8x512xf32>,
    } else {
    }
    %c0 = arith.constant 0 : index
    %c0_1 = arith.constant 0 : index
    %3 = vector.load %arg5[%c0, %c0_1] : memref<8x512xf32, #tpu.memory_space<vmem>>, vector<1x512xf32>
    %c0_2 = arith.constant 0 : index
    %c0_3 = arith.constant 0 : index
    %4 = vector.load %arg3[%c0_2, %c0_3] : memref<2x512xf32, #tpu.memory_space<vmem>>, vector<2x512xf32>
    %cst = arith.constant dense<0.000000e+00> : vector<512xf32>
    %5 = vector.multi_reduction <add>, %4, %cst [0] : vector<2x512xf32> to vector<512xf32>
    %6 = vector.shape_cast %5 : vector<512xf32> to vector<1x512xf32>
    %7 = arith.addf %3, %6 : vector<1x512xf32>
    %c0_4 = arith.constant 0 : index
    %c0_5 = arith.constant 0 : index
    %8 = vector.load %arg5[%c0_4, %c0_5] : memref<8x512xf32, #tpu.memory_space<vmem>>, vector<1x512xf32>
    tpu.vector_store %arg5[%c0_4, %c0_5], %7 {strides = array<i32>} : memref<8x512xf32, #tpu.memory_space<vmem>>, vector<1x512xf32>,
    %c0_i32_6 = arith.constant 0 : i32
    %9 = arith.cmpi eq, %arg1, %c0_i32_6 : i32
    %10 = arith.extui %9 : i1 to i32
    %c0_i32_7 = arith.constant 0 : i32
    %11 = arith.cmpi ne, %10, %c0_i32_7 : i32
    scf.if %11 {
      %c0_8 = arith.constant 0 : index
      %12 = memref.load %arg2[%c0_8] : memref<5xf32, #tpu.memory_space<smem>>
      %c1 = arith.constant 1 : index
      %13 = memref.load %arg2[%c1] : memref<5xf32, #tpu.memory_space<smem>>
      %c2 = arith.constant 2 : index
      %14 = memref.load %arg2[%c2] : memref<5xf32, #tpu.memory_space<smem>>
      %c3 = arith.constant 3 : index
      %15 = memref.load %arg2[%c3] : memref<5xf32, #tpu.memory_space<smem>>
      %c4 = arith.constant 4 : index
      %16 = memref.load %arg2[%c4] : memref<5xf32, #tpu.memory_space<smem>>
      %c0_9 = arith.constant 0 : index
      %c0_10 = arith.constant 0 : index
      %17 = vector.load %arg5[%c0_9, %c0_10] : memref<8x512xf32, #tpu.memory_space<vmem>>, vector<8x512xf32>
      %cst_11 = arith.constant dense<0.000000e+00> : vector<512xf32>
      %18 = vector.multi_reduction <add>, %17, %cst_11 [0] : vector<8x512xf32> to vector<512xf32>
      %19 = vector.shape_cast %18 : vector<512xf32> to vector<1x512xf32>
      %20 = vector.broadcast %16 : f32 to vector<1x512xf32>
      %21 = arith.mulf %19, %20 : vector<1x512xf32>
      %22 = vector.broadcast %12 : f32 to vector<1x512xf32>
      %23 = arith.mulf %22, %21 : vector<1x512xf32>
      %24 = vector.broadcast %13 : f32 to vector<1x512xf32>
      %25 = arith.subf %23, %24 : vector<1x512xf32>
      %26 = arith.negf %25 : vector<1x512xf32>
      %27 = math.exp %26 : vector<1x512xf32>
      %cst_12 = arith.constant 1.000000e+00 : f32
      %28 = vector.broadcast %cst_12 : f32 to vector<1x512xf32>
      %29 = arith.addf %28, %27 : vector<1x512xf32>
      %30 = arith.divf %28, %29 : vector<1x512xf32>
      %31 = vector.broadcast %14 : f32 to vector<1x512xf32>
      %32 = arith.subf %30, %31 : vector<1x512xf32>
      %33 = vector.broadcast %15 : f32 to vector<1x512xf32>
      %34 = arith.mulf %32, %33 : vector<1x512xf32>
      %c0_13 = arith.constant 0 : index
      %c0_14 = arith.constant 0 : index
      %35 = vector.load %arg4[%c0_13, %c0_14] : memref<1x512xf32, #tpu.memory_space<vmem>>, vector<1x512xf32>
      tpu.vector_store %arg4[%c0_13, %c0_14], %34 {strides = array<i32>} : memref<1x512xf32, #tpu.memory_space<vmem>>, vector<1x512xf32>,
    } else {
    }
    return
  }
  func.func @transform_0(%arg0: i32, %arg1: i32) -> i32 {
    %c0_i32 = arith.constant 0 : i32
    %c0_i32_0 = arith.constant 0 : i32
    return %c0_i32 : i32
  }
  func.func @transform_1(%arg0: i32, %arg1: i32) -> (i32, i32) {
    %c0_i32 = arith.constant 0 : i32
    return %arg1, %arg0 : i32, i32
  }
  func.func @transform_2(%arg0: i32, %arg1: i32) -> (i32, i32) {
    %c0_i32 = arith.constant 0 : i32
    %c0_i32_0 = arith.constant 0 : i32
    return %c0_i32, %arg0 : i32, i32
  }
}

</mosaic_0001>

<llo_original>
// kernel: tpu_custom_call.1
$region0: #{tpu_custom_call.1}
  #allocation0 [shape = 'u32[]', space=smem, size = 0x4, offset = 0x4, fixed_abs, tag = 'smem constant byte address 0x4 - core index']
  #allocation1 [shape = 'u32[144,128]{1,0:T(1,128)}', space=vmem, size = 0x12000, scoped, tag = 'internal scratch']
  #allocation2 [shape = 'f32[8,512]{1,0:T(8,128)}', space=vmem, size = 0x4000, scoped, tag = 'scratch operand']
  %s0 = inlined_call_operand.hbm [shape: f32[5], index: 0, kind: input, shape index: {}]
  %s1 = inlined_call_operand.hbm [shape: f32[2,1024], index: 1, kind: input, shape index: {}]
  %s2 = inlined_call_operand.hbm [shape: f32[1,1024], index: 2, kind: output, shape index: {}]
  %s3 = sld [smem:[#allocation0]]
  $region57: #{tpu_custom_call.1} parent=0
    _
  %s5 = ssub.s32 1, %s3
  %s6 = scalar_select 0, %s5, %s3
  $region1: #{tpu_custom_call.1} parent=0
    #allocation3 [shape = 'u8[512]{0}', space=smem, size = 0x200, scoped, tag = 'input window, operand 0, single buffered']
    #allocation4 [shape = 's32[2]{0}', space=sflag, size = 0x8, scoped, tag = 'scoped memory for tpu_custom_call.1']
    #allocation5 [shape = 's32[2]{0}', space=sflag, size = 0x8, scoped, tag = 'scoped memory for tpu_custom_call.1']
    #allocation6 [shape = 's32[2]{0}', space=sflag, size = 0x8, scoped, tag = 'scoped memory for tpu_custom_call.1']
    #allocation7 [shape = 'u8[8192]{0}', space=vmem, size = 0x2000, scoped, tag = 'input window, operand 1']
    #allocation8 [shape = 'u8[4096]{0}', space=vmem, size = 0x1000, scoped, tag = 'output window, operand 0']
    %7 = vsyncpa [#allocation6], 0
    %8 = vsyncpa [#allocation4], 0
    %s9 = scalar_lea.sflag [#allocation4], 1
    %10 = vsyncpa %s9, 0
    %11 = vsyncpa [#allocation5], 0
    %s12 = scalar_lea.sflag [#allocation5], 1
    %13 = vsyncpa %s12, 0
    loop: start=0, step=1, limit=4
    $region2: #{tpu_custom_call.1} parent=1 // loop_pre_header
      _
    $region3: #{tpu_custom_call.1} parent=1 // loop_header
      %s15 = sphi 0, %s19
      %p16 = scmp.ge.s32.totalorder %s15, 4
      %s22 = sphi 0, %s34
      %s23 = sphi 0, %s30
      %s24 = sphi 0, %s22
      %s25 = sphi 0, %s23
      %s26 = sphi 0, %s24
      %s27 = sphi 0, %s25
      %s35 = sphi 0, %s35
      %s37 = sphi 0, %s35
      %s38 = sphi 0, %s37
      %s52 = sphi 0, %s38
      %s60 = sphi 0, %s62
      %s63 = sphi 0, %s60
      %s64 = sphi 0, %s63
      %s80 = sphi 0, %s64
      %s86 = sphi 0, %s88
      %s89 = sphi 0, %s86
      %s90 = sphi 0, %s89
      %s106 = sphi 0, %s90
    $region4: #{tpu_custom_call.1} parent=1 // loop_header_branch
      %18 = sbr.rel (%p16) target = $region8
    $region5: #{tpu_custom_call.1} parent=1 // loop_body
      %s20 = ssub.s32 %s15, 1
      %s21 = ssub.s32 %s15, 2
      %s28 = sadd.s32 1, %s23
      %p29 = scmp.ge.s32.totalorder %s28, 1
      %s30 = scalar_select %p29, 0, %s28
      %s31 = sadd.s32 1, %s22
      %s32 = scalar_select %p29, %s31, %s22
      %p33 = scmp.ge.s32.totalorder %s32, 2
      %s34 = scalar_select %p33, 0, %s32
      %s36 = sadd.s32 %s35, 1
      %p39 = scmp.eq.s32.totalorder %s15, 1
      %p40 = scmp.ne.s32.totalorder %s35, %s37
      %p41 = scmp.eq.s32.totalorder %s15, 0
      %p42 = por %p40, %p41
      %p43 = scmp.ne.s32.totalorder %s35, %s37
      %p44 = scmp.eq.s32.totalorder %s20, 1
      %p45 = por %p43, %p44
      %p46 = scmp.ne.s32.totalorder %s37, %s38
      %p47 = scmp.eq.s32.totalorder %s20, 0
      %p48 = por %p46, %p47
      %p49 = scmp.ne.s32.totalorder %s37, %s38
      %p50 = scmp.eq.s32.totalorder %s21, 1
      %p51 = por %p49, %p50
      %p53 = scmp.ne.s32.totalorder %s38, %s52
      %p54 = scmp.eq.s32.totalorder %s21, 0
      %p55 = por %p53, %p54
      %s56 = ssub.s32 %s23, %s30
      %s57 = ssub.s32 %s22, %s34
      %s58 = sor.u32 %s56, %s57
      %p59 = scmp.eq.s32.totalorder %s58, 0
      %s61 = sadd.s32 %s60, 1
      %s62 = scalar_select %p59, %s60, %s61
      %p65 = pneg %p59
      %p66 = scmp.eq.s32.totalorder %s15, 1
      %p67 = por %p65, %p66
      %p68 = scmp.ne.s32.totalorder %s60, %s63
      %p69 = scmp.eq.s32.totalorder %s15, 0
      %p70 = por %p68, %p69
      %p71 = scmp.ne.s32.totalorder %s60, %s63
      %p72 = scmp.eq.s32.totalorder %s20, 1
      %p73 = por %p71, %p72
      %p74 = scmp.ne.s32.totalorder %s63, %s64
      %p75 = scmp.eq.s32.totalorder %s20, 0
      %p76 = por %p74, %p75
      %p77 = scmp.ne.s32.totalorder %s63, %s64
      %p78 = scmp.eq.s32.totalorder %s21, 1
      %p79 = por %p77, %p78
      %p81 = scmp.ne.s32.totalorder %s64, %s80
      %p82 = scmp.eq.s32.totalorder %s21, 0
      %p83 = por %p81, %p82
      %s84 = ssub.s32 %s22, %s34
      %p85 = scmp.eq.s32.totalorder %s84, 0
      %s87 = sadd.s32 %s86, 1
      %s88 = scalar_select %p85, %s86, %s87
      %p91 = pneg %p85
      %p92 = scmp.eq.s32.totalorder %s15, 1
      %p93 = por %p91, %p92
      %p94 = scmp.ne.s32.totalorder %s86, %s89
      %p95 = scmp.eq.s32.totalorder %s15, 0
      %p96 = por %p94, %p95
      %p97 = scmp.ne.s32.totalorder %s86, %s89
      %p98 = scmp.eq.s32.totalorder %s20, 1
      %p99 = por %p97, %p98
      %p100 = scmp.ne.s32.totalorder %s89, %s90
      %p101 = scmp.eq.s32.totalorder %s20, 0
      %p102 = por %p100, %p101
      %p103 = scmp.ne.s32.totalorder %s89, %s90
      %p104 = scmp.eq.s32.totalorder %s21, 1
      %p105 = por %p103, %p104
      %p107 = scmp.ne.s32.totalorder %s90, %s106
      %p108 = scmp.eq.s32.totalorder %s21, 0
      %p109 = por %p107, %p108
      %p110 = scmp.le.s32.totalorder 1, %s15
      %p111 = scmp.lt.s32.totalorder %s15, 3
      %p112 = pnand %p110, %p111
      %p113 = pneg %p112
      // Predicated region
      $region9: #{tpu_custom_call.1} parent=5 // pred_check
        _
      $region10: #{tpu_custom_call.1} parent=5 // pred_check_branch
        %115 = sbr.rel (%p112) target = $region12
      $region11: #{tpu_custom_call.1} parent=5 // pred_region
        %s116 = ssub.s32 %s15, 1
        // Predicated region
        $region13: #{tpu_custom_call.1} parent=11 // pred_check
          %p117 = pneg %p48
        $region14: #{tpu_custom_call.1} parent=11 // pred_check_branch
          %119 = sbr.rel (%p117) target = $region16
        $region15: #{tpu_custom_call.1} parent=11 // pred_region
          %s121 = ssub.s32 16, 16
          %122 = vsyncadd [#allocation6], %s121
          %125 = dma.hbm_to_smem %s0, 16, [#allocation3], [#allocation6]
        $region16: #{tpu_custom_call.1} parent=11 // pred_fallthru
          _
      $region12: #{tpu_custom_call.1} parent=5 // pred_fallthru
        _
      %p126 = scmp.lt.s32.totalorder %s15, 2
      // Predicated region
      $region17: #{tpu_custom_call.1} parent=5 // pred_check
        %p127 = pneg %p126
      $region18: #{tpu_custom_call.1} parent=5 // pred_check_branch
        %129 = sbr.rel (%p127) target = $region20
      $region19: #{tpu_custom_call.1} parent=5 // pred_region
        // Predicated region
        $region21: #{tpu_custom_call.1} parent=19 // pred_check
          %p130 = pneg %p70
        $region22: #{tpu_custom_call.1} parent=19 // pred_check_branch
          %132 = sbr.rel (%p130) target = $region24
        $region23: #{tpu_custom_call.1} parent=19 // pred_region
          %s133 = sand.u32 %s60, 1
          %s134 = scalar_lea.sflag [#allocation4], %s133
          %s135 = sand.u32 %s60, 1
          %s136 = smul.addr %s135, 8
          %s137 = scalar_lea.vmem [#allocation7], %s136
          %s138 = smul.u32 4, %s22
          %s140 = ssub.s32 128, 128
          %141 = vsyncadd %s134, %s140
          %s142 = smul.addr %s23, 8
          %s143 = sadd.s32 %s138, %s142
          %s144 = smul.addr %s143, 32
          %s145 = scalar_lea.hbm %s1, %s144
          %s147 = sshll.u32 %s137, 4
          %s148 = int_to_ptr.vmem [resolvable:$true] %s147
          %150 = dma.hbm_to_vmem [thread:$0]  %s145, 128, %s148, %s134
        $region24: #{tpu_custom_call.1} parent=19 // pred_fallthru
          _
      $region20: #{tpu_custom_call.1} parent=5 // pred_fallthru
        _
      %p151 = scmp.le.s32.totalorder 1, %s15
      %p152 = scmp.lt.s32.totalorder %s15, 3
      %p153 = pnand %p151, %p152
      %p154 = pneg %p153
      // Predicated region
      $region25: #{tpu_custom_call.1} parent=5 // pred_check
        _
      $region26: #{tpu_custom_call.1} parent=5 // pred_check_branch
        %156 = sbr.rel (%p153) target = $region28
      $region27: #{tpu_custom_call.1} parent=5 // pred_region
        %s157 = ssub.s32 %s15, 1
        // Predicated region
        $region29: #{tpu_custom_call.1} parent=27 // pred_check
          %p158 = pneg %p48
        $region30: #{tpu_custom_call.1} parent=27 // pred_check_branch
          %160 = sbr.rel (%p158) target = $region32
        $region31: #{tpu_custom_call.1} parent=27 // pred_region
          %161 = dma.done [#allocation6], 16
        $region32: #{tpu_custom_call.1} parent=27 // pred_fallthru
          _
        %s162 = sand.u32 %s63, 1
        %s163 = scalar_lea.sflag [#allocation4], %s162
        %s164 = sand.u32 %s63, 1
        %s165 = smul.addr %s164, 8
        %s166 = scalar_lea.vmem [#allocation7], %s165
        // Predicated region
        $region33: #{tpu_custom_call.1} parent=27 // pred_check
          %p167 = pneg %p76
        $region34: #{tpu_custom_call.1} parent=27 // pred_check_branch
          %169 = sbr.rel (%p167) target = $region36
        $region35: #{tpu_custom_call.1} parent=27 // pred_region
          %170 = dma.done %s163, 128
        $region36: #{tpu_custom_call.1} parent=27 // pred_fallthru
          _
        %171 = sfence
        %p172 = pneg %p48
        %p173 = pneg %p45
        %s174 = sand.u32 %s63, 1
        %s175 = scalar_lea.sflag [#allocation4], %s174
        %s176 = sand.u32 %s63, 1
        %s177 = smul.addr %s176, 8
        %s178 = scalar_lea.vmem [#allocation7], %s177
        %p179 = pneg %p76
        %p180 = pneg %p73
        %p181 = pneg %p102
        %p182 = pneg %p99
        %s183 = sand.u32 %s89, 1
        %s184 = scalar_lea.sflag [#allocation5], %s183
        %s185 = sand.u32 %s89, 1
        %s186 = smul.addr %s185, 4
        %s187 = scalar_lea.vmem [#allocation8], %s186
        %s188 = smul.u32 4, %s24
        %s189 = smul.u32 4, %s24
        %p190 = scmp.eq.s32.totalorder %s25, 0
        // Predicated region
        $region37: #{tpu_custom_call.1} parent=27 // pred_check
          %p191 = pneg %p190
        $region38: #{tpu_custom_call.1} parent=27 // pred_check_branch
          %193 = sbr.rel (%p191) target = $region40
        $region39: #{tpu_custom_call.1} parent=27 // pred_region
          %194 = vst [vmem:[#allocation2] sm:$0xff] 0.0
          %195 = vst [vmem:[#allocation2 + $0x8] sm:$0xff] 0.0
          %196 = vst [vmem:[#allocation2 + $0x10] sm:$0xff] 0.0
          %197 = vst [vmem:[#allocation2 + $0x18] sm:$0xff] 0.0
        $region40: #{tpu_custom_call.1} parent=27 // pred_fallthru
          _
        %v198 = vld [vmem:[#allocation2] ss:$8 sm:$0xf]
        %v199 = vld [vmem:[%s166] sm:$0xff]
        %v201 = vcombine.high %v199, %v199
        %v203 = vunpack.c.l.s4 1983009808
        %v204 = vunpack.c.0.s8 %v203
        %v205 = vlaneseq
        %v206 = vshrl.u32 %v205, 7
        %v207 = vsub.s32 %v204, %v206
        %v208 = vrot.slane %v199, %v207
        %v210 = vunpack.c.l.s4 1983009808
        %v211 = vunpack.c.0.s8 %v210
        %v212 = vlaneseq
        %v213 = vshrl.u32 %v212, 7
        %v214 = vsub.s32 %v211, %v213
        %v215 = vrot.slane %v201, %v214
        %v216 = vcombine.high %v208, %v208
        %v217 = vcombine.high %v215, %v215
        %vm222 = vcmask 1041408
        %v223 = vsel %vm222, %v208, 0.0
        %v224 = vrot.slane %v223, 4
        %v225 = vadd.f32 %v223, %v224
        %v226 = vrot.slane %v225, 2
        %v227 = vadd.f32 %v225, %v226
        %v228 = vrot.slane %v227, 1
        %v229 = vadd.f32 %v227, %v228
        %v230 = vsel %vm222, %v216, 0.0
        %v231 = vrot.slane %v230, 4
        %v232 = vadd.f32 %v230, %v231
        %v233 = vrot.slane %v232, 2
        %v234 = vadd.f32 %v232, %v233
        %v235 = vrot.slane %v234, 1
        %v236 = vadd.f32 %v234, %v235
        %v237 = vsel %vm222, %v215, 0.0
        %v238 = vrot.slane %v237, 4
        %v239 = vadd.f32 %v237, %v238
        %v240 = vrot.slane %v239, 2
        %v241 = vadd.f32 %v239, %v240
        %v242 = vrot.slane %v241, 1
        %v243 = vadd.f32 %v241, %v242
        %v244 = vsel %vm222, %v217, 0.0
        %v245 = vrot.slane %v244, 4
        %v246 = vadd.f32 %v244, %v245
        %v247 = vrot.slane %v246, 2
        %v248 = vadd.f32 %v246, %v247
        %v249 = vrot.slane %v248, 1
        %v250 = vadd.f32 %v248, %v249
        %v255 = vcombine.low %v229, %v236
        %v256 = vcombine.low %v243, %v250
        %v258 = vunpack.c.l.s4 1966171168
        %v259 = vunpack.c.0.s8 %v258
        %v260 = vlaneseq
        %v261 = vshrl.u32 %v260, 7
        %v262 = vsub.s32 %v259, %v261
        %v263 = vrot.slane %v255, %v262
        %v265 = vunpack.c.l.s4 1966171168
        %v266 = vunpack.c.0.s8 %v265
        %v267 = vlaneseq
        %v268 = vshrl.u32 %v267, 7
        %v269 = vsub.s32 %v266, %v268
        %v270 = vrot.slane %v256, %v269
        %v271 = vcombine.low %v263, %v270
        %v273 = vunpack.c.l.s4 1966171168
        %v274 = vunpack.c.0.s8 %v273
        %v275 = vlaneseq
        %v276 = vshrl.u32 %v275, 7
        %v277 = vsub.s32 %v274, %v276
        %v278 = vrot.slane %v271, %v277
        %v280 = vadd.f32 %v198, %v278
        %v281 = vlaneseq
        %vm282 = vcmp.ge.s32.totalorder %v281, 0
        %vm283 = vcmp.lt.s32.totalorder %v281, 512
        %vm284 = vmand %vm282, %vm283
        %285 = vst.msk [vmem:[#allocation2] ss:$8 sm:$0xf] %vm284, %v280
        %286 = vst.msk [vmem:[#allocation2] ss:$8 sm:$0x0] %vm284, %v280
        // Predicated region
        $region41: #{tpu_custom_call.1} parent=27 // pred_check
          %p287 = pneg %p190
        $region42: #{tpu_custom_call.1} parent=27 // pred_check_branch
          %289 = sbr.rel (%p287) target = $region44
        $region43: #{tpu_custom_call.1} parent=27 // pred_region
          %s290 = sld [smem:[#allocation3]]
          %s291 = sld [smem:[#allocation3 + $0x1]]
          %s292 = sld [smem:[#allocation3 + $0x2]]
          %s293 = sld [smem:[#allocation3 + $0x3]]
          %s294 = sld [smem:[#allocation3 + $0x4]]
          %v295 = vld [vmem:[#allocation2] sm:$0xff]
          %v296 = vld [vmem:[#allocation2 + $0x8] sm:$0xff]
          %v297 = vld [vmem:[#allocation2 + $0x10] sm:$0xff]
          %v298 = vld [vmem:[#allocation2 + $0x18] sm:$0xff]
          %v299 = vrot.slane %v295, 4
          %v300 = vadd.f32 %v295, %v299
          %v301 = vrot.slane %v300, 2
          %v302 = vadd.f32 %v300, %v301
          %v303 = vrot.slane %v302, 1
          %v304 = vadd.f32 %v302, %v303
          %v305 = vrot.slane %v296, 4
          %v306 = vadd.f32 %v296, %v305
          %v307 = vrot.slane %v306, 2
          %v308 = vadd.f32 %v306, %v307
          %v309 = vrot.slane %v308, 1
          %v310 = vadd.f32 %v308, %v309
          %v311 = vrot.slane %v297, 4
          %v312 = vadd.f32 %v297, %v311
          %v313 = vrot.slane %v312, 2
          %v314 = vadd.f32 %v312, %v313
          %v315 = vrot.slane %v314, 1
          %v316 = vadd.f32 %v314, %v315
          %v317 = vrot.slane %v298, 4
          %v318 = vadd.f32 %v298, %v317
          %v319 = vrot.slane %v318, 2
          %v320 = vadd.f32 %v318, %v319
          %v321 = vrot.slane %v320, 1
          %v322 = vadd.f32 %v320, %v321
          %v323 = vstv %s294
          %v324 = vmul.f32 %v304, %v323
          %v325 = vmul.f32 %v310, %v323
          %v326 = vmul.f32 %v316, %v323
          %v327 = vmul.f32 %v322, %v323
          %v328 = vstv %s290
          %v329 = vmul.f32 %v328, %v324
          %v330 = vmul.f32 %v328, %v325
          %v331 = vmul.f32 %v328, %v326
          %v332 = vmul.f32 %v328, %v327
          %v333 = vstv %s291
          %v334 = vsub.f32 %v329, %v333
          %v335 = vsub.f32 %v330, %v333
          %v336 = vsub.f32 %v331, %v333
          %v337 = vsub.f32 %v332, %v333
          %v338 = vxor.u32 %v334, 2147483648
          %v339 = vxor.u32 %v335, 2147483648
          %v340 = vxor.u32 %v336, 2147483648
          %v341 = vxor.u32 %v337, 2147483648
          %v342 = vmul.f32 %v338, 1.442695
          %v343 = vpow.pop %v342
          %v344 = vmul.f32 %v339, 1.442695
          %v345 = vpow.pop %v344
          %v346 = vmul.f32 %v340, 1.442695
          %v347 = vpow.pop %v346
          %v348 = vmul.f32 %v341, 1.442695
          %v349 = vpow.pop %v348
          %v350 = vadd.f32 %v343, 1.0
          %v351 = vadd.f32 %v345, 1.0
          %v352 = vadd.f32 %v347, 1.0
          %v353 = vadd.f32 %v349, 1.0
          %v354 = vrcp.pop %v350
          %v355 = vmul.f32 1.0, %v354
          %v356 = vrcp.pop %v351
          %v357 = vmul.f32 1.0, %v356
          %v358 = vrcp.pop %v352
          %v359 = vmul.f32 1.0, %v358
          %v360 = vrcp.pop %v353
          %v361 = vmul.f32 1.0, %v360
          %v362 = vstv %s292
          %v363 = vsub.f32 %v355, %v362
          %v364 = vsub.f32 %v357, %v362
          %v365 = vsub.f32 %v359, %v362
          %v366 = vsub.f32 %v361, %v362
          %v367 = vstv %s293
          %v368 = vmul.f32 %v363, %v367
          %v369 = vmul.f32 %v364, %v367
          %v370 = vmul.f32 %v365, %v367
          %v371 = vmul.f32 %v366, %v367
          %v376 = vcombine.low %v368, %v369
          %v377 = vcombine.low %v370, %v371
          %v379 = vunpack.c.l.s4 1966171168
          %v380 = vunpack.c.0.s8 %v379
          %v381 = vlaneseq
          %v382 = vshrl.u32 %v381, 7
          %v383 = vsub.s32 %v380, %v382
          %v384 = vrot.slane %v376, %v383
          %v386 = vunpack.c.l.s4 1966171168
          %v387 = vunpack.c.0.s8 %v386
          %v388 = vlaneseq
          %v389 = vshrl.u32 %v388, 7
          %v390 = vsub.s32 %v387, %v389
          %v391 = vrot.slane %v377, %v390
          %v392 = vcombine.low %v384, %v391
          %v394 = vunpack.c.l.s4 1966171168
          %v395 = vunpack.c.0.s8 %v394
          %v396 = vlaneseq
          %v397 = vshrl.u32 %v396, 7
          %v398 = vsub.s32 %v395, %v397
          %v399 = vrot.slane %v392, %v398
          %401 = vst.msk [vmem:[%s187] sm:$0xf] %vm284, %v399
        $region44: #{tpu_custom_call.1} parent=27 // pred_fallthru
          _
        %s402 = sand.u32 %s89, 1
        %s403 = scalar_lea.sflag [#allocation5], %s402
        %s404 = sand.u32 %s89, 1
        %s405 = smul.addr %s404, 4
        %s406 = scalar_lea.vmem [#allocation8], %s405
        // Predicated region
        $region45: #{tpu_custom_call.1} parent=27 // pred_check
          %p407 = pneg %p99
        $region46: #{tpu_custom_call.1} parent=27 // pred_check_branch
          %409 = sbr.rel (%p407) target = $region48
        $region47: #{tpu_custom_call.1} parent=27 // pred_region
          %s410 = smul.u32 4, %s24
          %s412 = ssub.s32 64, 64
          %413 = vsyncadd %s403, %s412
          %s414 = smul.addr %s410, 16
          %s415 = scalar_lea.hbm %s2, %s414
          %s417 = sshll.u32 %s406, 4
          %s418 = int_to_ptr.vmem [resolvable:$true] %s417
          %420 = dma.vmem_to_hbm [thread:$0]  %s418, 64, %s415, %s403
        $region48: #{tpu_custom_call.1} parent=27 // pred_fallthru
          _
      $region28: #{tpu_custom_call.1} parent=5 // pred_fallthru
        _
      %p421 = scmp.le.s32.totalorder 2, %s15
      // Predicated region
      $region49: #{tpu_custom_call.1} parent=5 // pred_check
        %p422 = pneg %p421
      $region50: #{tpu_custom_call.1} parent=5 // pred_check_branch
        %424 = sbr.rel (%p422) target = $region52
      $region51: #{tpu_custom_call.1} parent=5 // pred_region
        %s425 = ssub.s32 %s15, 2
        // Predicated region
        $region53: #{tpu_custom_call.1} parent=51 // pred_check
          %p426 = pneg %p105
        $region54: #{tpu_custom_call.1} parent=51 // pred_check_branch
          %428 = sbr.rel (%p426) target = $region56
        $region55: #{tpu_custom_call.1} parent=51 // pred_region
          %s429 = sand.u32 %s90, 1
          %s430 = scalar_lea.sflag [#allocation5], %s429
          %s431 = sand.u32 %s90, 1
          %s432 = smul.addr %s431, 4
          %s433 = scalar_lea.vmem [#allocation8], %s432
          %434 = dma.done %s430, 64
        $region56: #{tpu_custom_call.1} parent=51 // pred_fallthru
          _
      $region52: #{tpu_custom_call.1} parent=5 // pred_fallthru
        _
    $region6: #{tpu_custom_call.1} parent=1 // loop_footer
      %s19 = sadd.s32 1, %s15
    $region7: #{tpu_custom_call.1} parent=1 // loop_footer_branch
      %14 = sbr.rel target = $region3
    $region8: #{tpu_custom_call.1} parent=1 // loop_exit
      _
    %435 = vsyncpa [#allocation4], 1
    %s436 = scalar_lea.sflag [#allocation4], 1
    %437 = vsyncpa %s436, 1
    %438 = vsyncpa [#allocation5], 1
    %s439 = scalar_lea.sflag [#allocation5], 1
    %440 = vsyncpa %s439, 1
    %441 = vsyncpa [#allocation6], 1
    %s442 = scalar_lea.sflag [#allocation6], 1
    %443 = vsyncpa %s442, 1

</llo_original>
